<compile_context>
chip_gen: v7x
topology: tpu7x:2x2x1
jax: 0.10.0
libtpu: 0.0.40
codegen_flags: <defaults>
</compile_context>

<pallas_src>
import functools
import math

import jax
import jax.numpy as jnp
from jax.experimental import pallas as pl
from jax.experimental.pallas import tpu as pltpu


def _round_up(n, m):
    return ((n + m - 1) // m) * m


_K_IN = 8  # sublane-aligned K for the input-side matmuls (>= num_states + num_actions + 1)


def _param_layout(h0, h1p):
    """Row offsets of each parameter section in the packed (rows, 128) buffer."""
    offs = {}
    r = 0
    for name, rows in (("w1a", h0), ("w2s", h1p), ("w2a", h1p), ("w3a", 8)):
        offs[name] = r
        r += _round_up(rows, 8)
    return offs, r


def critic_kernel(x_ref, p_ref, out_ref, *, h0, h1p, offs):
    """One batch tile of the Critic forward, batch on the LANE axis.

    x_ref   : (8, TB)   rows = [state^T ; action^T ; 1 ; 0-pad], batch along lanes
    p_ref   : (R, 128)  packed, zero-padded, transposed parameters (VMEM-resident)
    out_ref : (1, TB)   lane-dense q values (one real value per batch column)
    """
    x = x_ref[...]                                               # (8, TB)

    w1a = p_ref[offs["w1a"]:offs["w1a"] + h0, :_K_IN]            # (h0, 8)   [W1^T | b1]
    w2s = p_ref[offs["w2s"]:offs["w2s"] + h1p, :h0]              # (h1p, h0) W2_state^T (zero-padded rows)
    w2a = p_ref[offs["w2a"]:offs["w2a"] + h1p, :_K_IN]           # (h1p, 8)  [W2_action^T | b2 | const-1 row]
    w3a = p_ref[offs["w3a"]:offs["w3a"] + 8, :h1p]               # (8, h1p)  row 0 = [W3^T | b3]

    # Layer 1: out1^T = relu(W1^T @ state^T + b1)  (bias rides on the ones row of x).
    out1 = jnp.maximum(
        jnp.dot(w1a, x, preferred_element_type=jnp.float32), 0.0)            # (h0, TB)

    # Layer 2: out2^T = relu(W2s^T @ out1^T + W2a^T @ action^T + b2).
    # Row h1 of the (zero-padded) output is a constant-one row (weights 0,
    # "bias" 1) that carries b3 into the final dot; rows h1+1.. stay 0.
    out2 = jnp.maximum(
        jnp.dot(w2s, out1, preferred_element_type=jnp.float32)
        + jnp.dot(w2a, x, preferred_element_type=jnp.float32), 0.0)           # (h1p, TB)

    # Layer 3: q^T = W3^T @ out2^T + b3  (M padded to 8; only row 0 is real).
    q8 = jnp.dot(w3a, out2, preferred_element_type=jnp.float32)              # (8, TB)
    out_ref[...] = q8[0:1, :]                                                 # lane-dense (1, TB)


def critic_forward(state, action, packed, dims, *, block_b=4096):
    """state: (B, ns) f32, action: (B, na) f32 -> (B,) f32 Q-values."""
    ns, na, h0, h1 = dims
    if ns + na + 1 > _K_IN:
        # TODO(synk): generalize the packed layout to round (ns+na+1) up to a
        # multiple of 8 instead of assuming it fits in one 8-row group.
        raise NotImplementedError("num_states + num_actions + 1 must be <= 8")

    B = state.shape[0]
    h1p = _round_up(h1 + 1, 8)
    offs, _ = _param_layout(h0, h1p)

    # Batch tiling: lane-dense tiles (multiple of 128), always >= 2 grid steps
    # so ("parallel",) can shard across both v7x TensorCores, Bp % TB == 0.
    TB = _round_up(min(block_b, max((B + 1) // 2, 1)), 128)
    n_steps = max(2, (B + TB - 1) // TB)
    Bp = n_steps * TB

    # Assemble the transposed, K-padded input: rows = state^T, action^T, ones
    # (bias lane), zeros.  One tiny fused XLA op per call; for a training loop
    # this (and the weight packing) can be hoisted outside the step.
    xT = jnp.concatenate(
        [jnp.asarray(state, jnp.float32).T,
         jnp.asarray(action, jnp.float32).T,
         jnp.ones((1, B), jnp.float32),
         jnp.zeros((_K_IN - (ns + na + 1), B), jnp.float32)], axis=0)   # (8, B)
    xT = jnp.pad(xT, ((0, 0), (0, Bp - B)))                             # (8, Bp)

    kernel = functools.partial(critic_kernel, h0=h0, h1p=h1p, offs=offs)
    out = pl.pallas_call(
        kernel,
        out_shape=jax.ShapeDtypeStruct((1, Bp), jnp.float32),
        grid=(n_steps,),
        in_specs=[
            pl.BlockSpec((_K_IN, TB), lambda i: (0, i)),        # streamed input
            pl.BlockSpec(packed.shape, lambda i: (0, 0)),       # VMEM-resident weights
        ],
        out_specs=pl.BlockSpec((1, TB), lambda i: (0, i)),      # lane-dense q row
        compiler_params=pltpu.CompilerParams(
            dimension_semantics=("parallel",)),
    )(xT, packed)

    # torch .squeeze(): contiguous slice of the single q row, drop batch padding.
    return out[0, :B]


def init_params(key, num_states, num_actions, hidden=(64, 64)):
    """Deterministic init mirroring the PyTorch module's __init__ (forward parity
    only depends on using the same params for kernel and reference)."""
    h0, h1 = hidden
    k1, k2, k3, kb1, kb2, kb3 = jax.random.split(key, 6)

    # fanin_init: uniform(-v, v), v = 1/sqrt(weight.size(0)) = 1/sqrt(out_features)
    v1 = 1.0 / math.sqrt(h0)
    v2 = 1.0 / math.sqrt(h1)

    # Weights stored as (in, out) = transpose of PyTorch's (out, in).
    w1 = jax.random.uniform(k1, (num_states, h0), jnp.float32, -v1, v1)
    w2 = jax.random.uniform(k2, (h0 + num_actions, h1), jnp.float32, -v2, v2)
    w3 = jax.random.uniform(k3, (h1, 1), jnp.float32, -0.003, 0.003)

    # PyTorch default Linear bias init: uniform(-1/sqrt(fan_in), 1/sqrt(fan_in))
    bv1 = 1.0 / math.sqrt(num_states)
    bv2 = 1.0 / math.sqrt(h0 + num_actions)
    bv3 = 1.0 / math.sqrt(h1)
    b1 = jax.random.uniform(kb1, (1, h0), jnp.float32, -bv1, bv1)
    b2 = jax.random.uniform(kb2, (1, h1), jnp.float32, -bv2, bv2)
    b3 = jax.random.uniform(kb3, (1, 1), jnp.float32, -bv3, bv3)
    return w1, b1, w2, b2, w3, b3


def pack_params(w1, b1, w2, b2, w3, b3, num_states, num_actions, hidden=(64, 64)):
    """Pack all Critic parameters, transposed and bias-augmented, into ONE
    (rows, 128) f32 buffer (single resident DMA, full-lane rows)."""
    h0, h1 = hidden
    ns, na = num_states, num_actions
    assert ns + na + 1 <= _K_IN
    h1p = _round_up(h1 + 1, 8)
    offs, total_rows = _param_layout(h0, h1p)

    b1 = jnp.reshape(jnp.asarray(b1, jnp.float32), (h0,))
    b2 = jnp.reshape(jnp.asarray(b2, jnp.float32), (h1,))
    b3 = jnp.reshape(jnp.asarray(b3, jnp.float32), ())
    w1 = jnp.asarray(w1, jnp.float32)          # (ns, h0)
    w2 = jnp.asarray(w2, jnp.float32)          # (h0+na, h1)
    w3 = jnp.reshape(jnp.asarray(w3, jnp.float32), (h1,))

    # Layer-1, augmented+transposed: cols [0:ns] = W1^T, col ns+na = b1.
    w1a = jnp.zeros((h0, _K_IN), jnp.float32)
    w1a = w1a.at[:, :ns].set(w1.T)
    w1a = w1a.at[:, ns + na].set(b1)

    # Layer-2 state part, transposed, rows padded to h1p (extra rows are zero).
    w2s = jnp.zeros((h1p, h0), jnp.float32).at[:h1, :].set(w2[:h0, :].T)

    # Layer-2 action part + b2, plus a constant-one hidden row (row h1) whose
    # pre-activation is exactly 1 -> relu -> 1; it carries b3 into layer 3.
    w2a = jnp.zeros((h1p, _K_IN), jnp.float32)
    w2a = w2a.at[:h1, ns:ns + na].set(w2[h0:, :].T)
    w2a = w2a.at[:h1, ns + na].set(b2)
    w2a = w2a.at[h1, ns + na].set(1.0)

    # Layer-3, M padded to 8: row 0 = [W3^T | b3], other rows zero.
    w3a = jnp.zeros((8, h1p), jnp.float32)
    w3a = w3a.at[0, :h1].set(w3)
    w3a = w3a.at[0, h1].set(b3)

    packed = jnp.zeros((total_rows, 128), jnp.float32)
    for name, a in (("w1a", w1a), ("w2s", w2s), ("w2a", w2a), ("w3a", w3a)):
        r = offs[name]
        packed = packed.at[r:r + a.shape[0], :a.shape[1]].set(a)
    return packed


def reference_forward(state, action, w1, b1, w2, b2, w3, b3):
    """Pure-JAX reference matching the PyTorch graph exactly."""
    out1 = jnp.maximum(state @ w1 + b1, 0.0)
    sa = jnp.concatenate([out1, action], axis=-1)
    out2 = jnp.maximum(sa @ w2 + b2, 0.0)
    return (out2 @ w3 + b3)[:, 0]


if __name__ == "__main__":
    # Inverted-pendulum-like sizes: 3 states (cos, sin, theta_dot), 1 action.
    num_states, num_actions = 3, 1
    hidden = (64, 64)
    batch = 8

    key = jax.random.PRNGKey(0)
    kp, ks, ka = jax.random.split(key, 3)

    w1, b1, w2, b2, w3, b3 = init_params(kp, num_states, num_actions, hidden)
    packed = pack_params(w1, b1, w2, b2, w3, b3, num_states, num_actions, hidden)

    state = jax.random.normal(ks, (batch, num_states), jnp.float32)
    action = jax.random.normal(ka, (batch, num_actions), jnp.float32)

    q = critic_forward(state, action, packed,
                       (num_states, num_actions, hidden[0], hidden[1]))
    q = jax.block_until_ready(q)

    q_ref = reference_forward(state, action, w1, b1, w2, b2, w3, b3)
    assert q.shape == (batch,), q.shape
    # Tolerance accounts for MXU f32 accumulation order vs. XLA's default
    # matmul precision in the pure-JAX reference.
    assert jnp.allclose(q, q_ref, atol=1e-3, rtol=1e-3), (q, q_ref)

    print("KERNEL_OK")
</pallas_src>

<mosaic_0001>
module attributes {stable_mosaic.version = 11 : i64} {
  func.func @critic_kernel(%arg0: i32, %arg1: memref<8x128xf32, #tpu.memory_space<vmem>>, %arg2: memref<216x128xf32, #tpu.memory_space<vmem>>, %arg3: memref<1x128xf32, #tpu.memory_space<vmem>>) attributes {dimension_semantics = [#tpu.dimension_semantics<parallel>], iteration_bounds = array<i64: 2>, scalar_prefetch = 0 : i64, scratch_operands = 0 : i64, tpu.core_type = #tpu.core_type<tc>, window_params = [{transform_indices = @transform_0, window_bounds = array<i64: 8, 128>}, {pipeline_mode = #tpu.pipeline_mode<synchronous>, transform_indices = @transform_1, window_bounds = array<i64: 216, 128>}, {transform_indices = @transform_2, window_bounds = array<i64: 1, 128>}]} {
    %c0 = arith.constant 0 : index
    %c0_0 = arith.constant 0 : index
    %0 = vector.load %arg1[%c0, %c0_0] : memref<8x128xf32, #tpu.memory_space<vmem>>, vector<8x128xf32>
    %c0_1 = arith.constant 0 : index
    %c0_2 = arith.constant 0 : index
    %1 = vector.load %arg2[%c0_1, %c0_2] : memref<216x128xf32, #tpu.memory_space<vmem>>, vector<64x8xf32>
    %c64 = arith.constant 64 : index
    %c0_3 = arith.constant 0 : index
    %2 = vector.load %arg2[%c64, %c0_3] : memref<216x128xf32, #tpu.memory_space<vmem>>, vector<72x64xf32>
    %c136 = arith.constant 136 : index
    %c0_4 = arith.constant 0 : index
    %3 = vector.load %arg2[%c136, %c0_4] : memref<216x128xf32, #tpu.memory_space<vmem>>, vector<72x8xf32>
    %c208 = arith.constant 208 : index
    %c0_5 = arith.constant 0 : index
    %4 = vector.load %arg2[%c208, %c0_5] : memref<216x128xf32, #tpu.memory_space<vmem>>, vector<8x72xf32>
    %cst = arith.constant dense<0.000000e+00> : vector<64x128xf32>
    %5 = tpu.matmul %1, %0, %cst {dimension_numbers = #tpu.dot_dimension_numbers<[1], [0], [0], [1], [0, 0, 1, 1], [], []>} : vector<64x8xf32>, vector<8x128xf32>, vector<64x128xf32> -> vector<64x128xf32>
    %cst_6 = arith.constant 0.000000e+00 : f32
    %6 = vector.broadcast %cst_6 : f32 to vector<64x128xf32>
    %7 = arith.maximumf %5, %6 : vector<64x128xf32>
    %cst_7 = arith.constant dense<0.000000e+00> : vector<72x128xf32>
    %8 = tpu.matmul %2, %7, %cst_7 {dimension_numbers = #tpu.dot_dimension_numbers<[1], [0], [0], [1], [0, 0, 1, 1], [], []>} : vector<72x64xf32>, vector<64x128xf32>, vector<72x128xf32> -> vector<72x128xf32>
    %cst_8 = arith.constant dense<0.000000e+00> : vector<72x128xf32>
    %9 = tpu.matmul %3, %0, %cst_8 {dimension_numbers = #tpu.dot_dimension_numbers<[1], [0], [0], [1], [0, 0, 1, 1], [], []>} : vector<72x8xf32>, vector<8x128xf32>, vector<72x128xf32> -> vector<72x128xf32>
    %10 = arith.addf %8, %9 : vector<72x128xf32>
    %cst_9 = arith.constant 0.000000e+00 : f32
    %11 = vector.broadcast %cst_9 : f32 to vector<72x128xf32>
    %12 = arith.maximumf %10, %11 : vector<72x128xf32>
    %cst_10 = arith.constant dense<0.000000e+00> : vector<8x128xf32>
    %13 = tpu.matmul %4, %12, %cst_10 {dimension_numbers = #tpu.dot_dimension_numbers<[1], [0], [0], [1], [0, 0, 1, 1], [], []>} : vector<8x72xf32>, vector<72x128xf32>, vector<8x128xf32> -> vector<8x128xf32>
    %14 = vector.extract_strided_slice %13 {offsets = [0, 0], sizes = [1, 128], strides = [1, 1]} : vector<8x128xf32> to vector<1x128xf32>
    %c0_11 = arith.constant 0 : index
    %c0_12 = arith.constant 0 : index
    %15 = vector.load %arg3[%c0_11, %c0_12] : memref<1x128xf32, #tpu.memory_space<vmem>>, vector<1x128xf32>
    tpu.vector_store %arg3[%c0_11, %c0_12], %14 {strides = array<i32>} : memref<1x128xf32, #tpu.memory_space<vmem>>, vector<1x128xf32>,
    return
  }
  func.func @transform_0(%arg0: i32) -> (i32, i32) {
    %c0_i32 = arith.constant 0 : i32
    %c0_i32_0 = arith.constant 0 : i32
    return %c0_i32, %arg0 : i32, i32
  }
  func.func @transform_1(%arg0: i32) -> (i32, i32) {
    %c0_i32 = arith.constant 0 : i32
    %c0_i32_0 = arith.constant 0 : i32
    %c0_i32_1 = arith.constant 0 : i32
    return %c0_i32, %c0_i32_0 : i32, i32
  }
  func.func @transform_2(%arg0: i32) -> (i32, i32) {
    %c0_i32 = arith.constant 0 : i32
    %c0_i32_0 = arith.constant 0 : i32
    return %c0_i32, %arg0 : i32, i32
  }
}

</mosaic_0001>

<llo_original>
// kernel: tpu_custom_call.1
$region0: #{tpu_custom_call.1}
  #allocation0 [shape = 'u32[]', space=smem, size = 0x4, offset = 0x4, fixed_abs, tag = 'smem constant byte address 0x4 - core index']
  #allocation1 [shape = 'u32[144,128]{1,0:T(1,128)}', space=vmem, size = 0x12000, scoped, tag = 'internal scratch']
  %s0 = inlined_call_operand.hbm [shape: f32[8,256], index: 0, kind: input, shape index: {}]
  %s1 = inlined_call_operand.hbm [shape: f32[216,128], index: 1, kind: input, shape index: {}]
  %s2 = inlined_call_operand.hbm [shape: f32[1,256], index: 2, kind: output, shape index: {}]
  %s3 = sld [smem:[#allocation0]]
  $region49: #{tpu_custom_call.1} parent=0
    _
  %s5 = ssub.s32 1, %s3
  %s6 = scalar_select 0, %s5, %s3
  $region1: #{tpu_custom_call.1} parent=0
    #allocation2 [shape = 'u8[8192]{0}', space=vmem, size = 0x2000, scoped, tag = 'input window, operand 0']
    #allocation3 [shape = 's32[2]{0}', space=sflag, size = 0x8, scoped, tag = 'scoped memory for tpu_custom_call.1']
    #allocation4 [shape = 's32[2]{0}', space=sflag, size = 0x8, scoped, tag = 'scoped memory for tpu_custom_call.1']
    #allocation5 [shape = 'u8[110592]{0}', space=vmem, size = 0x1b000, scoped, tag = 'input window, operand 1, single buffered']
    #allocation6 [shape = 's32[1]{0}', space=sflag, size = 0x4, scoped, tag = 'scoped memory for tpu_custom_call.1']
    #allocation7 [shape = 'u8[1024]{0}', space=vmem, size = 0x400, scoped, tag = 'output window, operand 0']
    %7 = vsyncpa [#allocation3], 0
    %s8 = scalar_lea.sflag [#allocation3], 1
    %9 = vsyncpa %s8, 0
    %10 = vsyncpa [#allocation6], 0
    %11 = vsyncpa [#allocation4], 0
    %s12 = scalar_lea.sflag [#allocation4], 1
    %13 = vsyncpa %s12, 0
    loop: start=0, step=1, limit=4
    $region2: #{tpu_custom_call.1} parent=1 // loop_pre_header
      _
    $region3: #{tpu_custom_call.1} parent=1 // loop_header
      %s15 = sphi 0, %s19
      %p16 = scmp.ge.s32.totalorder %s15, 4
      %s25 = sphi 0, %s27
      %s28 = sphi 0, %s25
      %s29 = sphi 0, %s28
      %s45 = sphi 0, %s29
      %s49 = sphi 0, %s49
      %s51 = sphi 0, %s49
      %s52 = sphi 0, %s51
      %s66 = sphi 0, %s52
      %s72 = sphi 0, %s74
      %s75 = sphi 0, %s72
      %s76 = sphi 0, %s75
      %s92 = sphi 0, %s76
    $region4: #{tpu_custom_call.1} parent=1 // loop_header_branch
      %18 = sbr.rel (%p16) target = $region8
    $region5: #{tpu_custom_call.1} parent=1 // loop_body
      %s20 = ssub.s32 %s15, 1
      %s21 = ssub.s32 %s15, 2
      %s22 = sadd.s32 %s15, 1
      %s23 = ssub.s32 %s15, %s22
      %p24 = scmp.eq.s32.totalorder %s23, 0
      %s26 = sadd.s32 %s25, 1
      %s27 = scalar_select %p24, %s25, %s26
      %p30 = pneg %p24
      %p31 = scmp.eq.s32.totalorder %s15, 1
      %p32 = por %p30, %p31
      %p33 = scmp.ne.s32.totalorder %s25, %s28
      %p34 = scmp.eq.s32.totalorder %s15, 0
      %p35 = por %p33, %p34
      %p36 = scmp.ne.s32.totalorder %s25, %s28
      %p37 = scmp.eq.s32.totalorder %s20, 1
      %p38 = por %p36, %p37
      %p39 = scmp.ne.s32.totalorder %s28, %s29
      %p40 = scmp.eq.s32.totalorder %s20, 0
      %p41 = por %p39, %p40
      %p42 = scmp.ne.s32.totalorder %s28, %s29
      %p43 = scmp.eq.s32.totalorder %s21, 1
      %p44 = por %p42, %p43
      %p46 = scmp.ne.s32.totalorder %s29, %s45
      %p47 = scmp.eq.s32.totalorder %s21, 0
      %p48 = por %p46, %p47
      %s50 = sadd.s32 %s49, 1
      %p53 = scmp.eq.s32.totalorder %s15, 1
      %p54 = scmp.ne.s32.totalorder %s49, %s51
      %p55 = scmp.eq.s32.totalorder %s15, 0
      %p56 = por %p54, %p55
      %p57 = scmp.ne.s32.totalorder %s49, %s51
      %p58 = scmp.eq.s32.totalorder %s20, 1
      %p59 = por %p57, %p58
      %p60 = scmp.ne.s32.totalorder %s51, %s52
      %p61 = scmp.eq.s32.totalorder %s20, 0
      %p62 = por %p60, %p61
      %p63 = scmp.ne.s32.totalorder %s51, %s52
      %p64 = scmp.eq.s32.totalorder %s21, 1
      %p65 = por %p63, %p64
      %p67 = scmp.ne.s32.totalorder %s52, %s66
      %p68 = scmp.eq.s32.totalorder %s21, 0
      %p69 = por %p67, %p68
      %s70 = ssub.s32 %s15, %s22
      %p71 = scmp.eq.s32.totalorder %s70, 0
      %s73 = sadd.s32 %s72, 1
      %s74 = scalar_select %p71, %s72, %s73
      %p77 = pneg %p71
      %p78 = scmp.eq.s32.totalorder %s15, 1
      %p79 = por %p77, %p78
      %p80 = scmp.ne.s32.totalorder %s72, %s75
      %p81 = scmp.eq.s32.totalorder %s15, 0
      %p82 = por %p80, %p81
      %p83 = scmp.ne.s32.totalorder %s72, %s75
      %p84 = scmp.eq.s32.totalorder %s20, 1
      %p85 = por %p83, %p84
      %p86 = scmp.ne.s32.totalorder %s75, %s76
      %p87 = scmp.eq.s32.totalorder %s20, 0
      %p88 = por %p86, %p87
      %p89 = scmp.ne.s32.totalorder %s75, %s76
      %p90 = scmp.eq.s32.totalorder %s21, 1
      %p91 = por %p89, %p90
      %p93 = scmp.ne.s32.totalorder %s76, %s92
      %p94 = scmp.eq.s32.totalorder %s21, 0
      %p95 = por %p93, %p94
      %p96 = scmp.le.s32.totalorder 1, %s15
      %p97 = scmp.lt.s32.totalorder %s15, 3
      %p98 = pnand %p96, %p97
      %p99 = pneg %p98
      // Predicated region
      $region9: #{tpu_custom_call.1} parent=5 // pred_check
        _
      $region10: #{tpu_custom_call.1} parent=5 // pred_check_branch
        %101 = sbr.rel (%p98) target = $region12
      $region11: #{tpu_custom_call.1} parent=5 // pred_region
        %s102 = ssub.s32 %s15, 1
        // Predicated region
        $region13: #{tpu_custom_call.1} parent=11 // pred_check
          %p103 = pneg %p62
        $region14: #{tpu_custom_call.1} parent=11 // pred_check_branch
          %105 = sbr.rel (%p103) target = $region16
        $region15: #{tpu_custom_call.1} parent=11 // pred_region
          %s107 = ssub.s32 3456, 3456
          %108 = vsyncadd [#allocation6], %s107
          %s109 = sshll.u32 [#allocation5], 4
          %s110 = int_to_ptr.vmem [resolvable:$true] %s109
          %115 = dma.hbm_to_vmem [thread:$0]  %s1, 3456, %s110, [#allocation6], 128, 128, 8
        $region16: #{tpu_custom_call.1} parent=11 // pred_fallthru
          _
      $region12: #{tpu_custom_call.1} parent=5 // pred_fallthru
        _
      %p116 = scmp.lt.s32.totalorder %s15, 2
      // Predicated region
      $region17: #{tpu_custom_call.1} parent=5 // pred_check
        %p117 = pneg %p116
      $region18: #{tpu_custom_call.1} parent=5 // pred_check_branch
        %119 = sbr.rel (%p117) target = $region20
      $region19: #{tpu_custom_call.1} parent=5 // pred_region
        // Predicated region
        $region21: #{tpu_custom_call.1} parent=19 // pred_check
          %p120 = pneg %p35
        $region22: #{tpu_custom_call.1} parent=19 // pred_check_branch
          %122 = sbr.rel (%p120) target = $region24
        $region23: #{tpu_custom_call.1} parent=19 // pred_region
          %s123 = sand.u32 %s25, 1
          %s124 = scalar_lea.sflag [#allocation3], %s123
          %s125 = sand.u32 %s25, 1
          %s126 = smul.addr %s125, 8
          %s127 = scalar_lea.vmem [#allocation2], %s126
          %s129 = ssub.s32 128, 128
          %130 = vsyncadd %s124, %s129
          %s131 = smul.addr %s15, 128
          %s132 = scalar_lea.hbm %s0, %s131
          %s134 = sshll.u32 %s127, 4
          %s135 = int_to_ptr.vmem [resolvable:$true] %s134
          %137 = dma.hbm_to_vmem [thread:$0]  %s132, 128, %s135, %s124
        $region24: #{tpu_custom_call.1} parent=19 // pred_fallthru
          _
      $region20: #{tpu_custom_call.1} parent=5 // pred_fallthru
        _
      %p138 = scmp.le.s32.totalorder 1, %s15
      %p139 = scmp.lt.s32.totalorder %s15, 3
      %p140 = pnand %p138, %p139
      %p141 = pneg %p140
      // Predicated region
      $region25: #{tpu_custom_call.1} parent=5 // pred_check
        _
      $region26: #{tpu_custom_call.1} parent=5 // pred_check_branch
        %143 = sbr.rel (%p140) target = $region28
      $region27: #{tpu_custom_call.1} parent=5 // pred_region
        %s144 = ssub.s32 %s15, 1
        %s145 = sand.u32 %s28, 1
        %s146 = scalar_lea.sflag [#allocation3], %s145
        %s147 = sand.u32 %s28, 1
        %s148 = smul.addr %s147, 8
        %s149 = scalar_lea.vmem [#allocation2], %s148
        // Predicated region
        $region29: #{tpu_custom_call.1} parent=27 // pred_check
          %p150 = pneg %p41
        $region30: #{tpu_custom_call.1} parent=27 // pred_check_branch
          %152 = sbr.rel (%p150) target = $region32
        $region31: #{tpu_custom_call.1} parent=27 // pred_region
          %153 = dma.done %s146, 128
        $region32: #{tpu_custom_call.1} parent=27 // pred_fallthru
          _
        // Predicated region
        $region33: #{tpu_custom_call.1} parent=27 // pred_check
          %p154 = pneg %p62
        $region34: #{tpu_custom_call.1} parent=27 // pred_check_branch
          %156 = sbr.rel (%p154) target = $region36
        $region35: #{tpu_custom_call.1} parent=27 // pred_region
          %157 = dma.done [#allocation6], 3456
        $region36: #{tpu_custom_call.1} parent=27 // pred_fallthru
          _
        %s158 = sand.u32 %s28, 1
        %s159 = scalar_lea.sflag [#allocation3], %s158
        %s160 = sand.u32 %s28, 1
        %s161 = smul.addr %s160, 8
        %s162 = scalar_lea.vmem [#allocation2], %s161
        %p163 = pneg %p41
        %p164 = pneg %p38
        %p165 = pneg %p62
        %p166 = pneg %p59
        %p167 = pneg %p88
        %p168 = pneg %p85
        %s169 = sand.u32 %s75, 1
        %s170 = scalar_lea.sflag [#allocation4], %s169
        %s171 = sand.u32 %s75, 1
        %s172 = scalar_lea.vmem [#allocation7], %s171
        %v173 = vld [vmem:[%s149] sm:$0xff]
        %v174 = vld [vmem:[#allocation5] sm:$0xff]
        %v175 = vld [vmem:[#allocation5 + $0x8] sm:$0xff]
        %v176 = vld [vmem:[#allocation5 + $0x10] sm:$0xff]
        %v177 = vld [vmem:[#allocation5 + $0x18] sm:$0xff]
        %v178 = vld [vmem:[#allocation5 + $0x20] sm:$0xff]
        %v179 = vld [vmem:[#allocation5 + $0x28] sm:$0xff]
        %v180 = vld [vmem:[#allocation5 + $0x30] sm:$0xff]
        %v181 = vld [vmem:[#allocation5 + $0x38] sm:$0xff]
        %v182 = vld [vmem:[#allocation5 + $0x40] sm:$0xff]
        %v183 = vld [vmem:[#allocation5 + $0x48] sm:$0xff]
        %v184 = vld [vmem:[#allocation5 + $0x50] sm:$0xff]
        %v185 = vld [vmem:[#allocation5 + $0x58] sm:$0xff]
        %v186 = vld [vmem:[#allocation5 + $0x60] sm:$0xff]
        %v187 = vld [vmem:[#allocation5 + $0x68] sm:$0xff]
        %v188 = vld [vmem:[#allocation5 + $0x70] sm:$0xff]
        %v189 = vld [vmem:[#allocation5 + $0x78] sm:$0xff]
        %v190 = vld [vmem:[#allocation5 + $0x80] sm:$0xff]
        %v191 = vld [vmem:[#allocation5 + $0x88] sm:$0xff]
        %v192 = vld [vmem:[#allocation5 + $0x90] sm:$0xff]
        %v193 = vld [vmem:[#allocation5 + $0x98] sm:$0xff]
        %v194 = vld [vmem:[#allocation5 + $0xa0] sm:$0xff]
        %v195 = vld [vmem:[#allocation5 + $0xa8] sm:$0xff]
        %v196 = vld [vmem:[#allocation5 + $0xb0] sm:$0xff]
        %v197 = vld [vmem:[#allocation5 + $0xb8] sm:$0xff]
        %v198 = vld [vmem:[#allocation5 + $0xc0] sm:$0xff]
        %v199 = vld [vmem:[#allocation5 + $0xc8] sm:$0xff]
        %v200 = vld [vmem:[#allocation5 + $0xd0] sm:$0xff]
        %vm201 = vcmask 64512
        %v203 = vsel %vm201, %v174, 0
        %v206 = vsel %vm201, %v175, 0
        %v209 = vsel %vm201, %v176, 0
        %v212 = vsel %vm201, %v177, 0
        %v215 = vsel %vm201, %v178, 0
        %v218 = vsel %vm201, %v179, 0
        %v221 = vsel %vm201, %v180, 0
        %v224 = vsel %vm201, %v181, 0
        %226 = vmatprep.subr.mxu0 0.0
        %227 = vmatpush1.msra.mxu0 %v173
        %228 = vmatprep.subr.mxu0 0.0
        %229 = vmatpush1.msra.mxu0 0.0
        %230 = vmatprep.subr.mxu0 0.0
        %231 = vmatpush1.msra.mxu0 0.0
        %232 = vmatprep.subr.mxu0 0.0
        %233 = vmatpush1.msra.mxu0 0.0
        %234 = vmatprep.subr.mxu0 0.0
        %235 = vmatpush1.msra.mxu0 0.0
        %236 = vmatprep.subr.mxu0 0.0
        %237 = vmatpush1.msra.mxu0 0.0
        %238 = vmatprep.subr.mxu0 0.0
        %239 = vmatpush1.msra.mxu0 0.0
        %240 = vmatprep.subr.mxu0 0.0
        %241 = vmatpush1.msra.mxu0 0.0
        %242 = vmatprep.subr.mxu0 0.0
        %243 = vmatpush1.msra.mxu0 0.0
        %244 = vmatprep.subr.mxu0 0.0
        %245 = vmatpush1.msra.mxu0 0.0
        %246 = vmatprep.subr.mxu0 0.0
        %247 = vmatpush1.msra.mxu0 0.0
        %248 = vmatprep.subr.mxu0 0.0
        %249 = vmatpush1.msra.mxu0 0.0
        %250 = vmatprep.subr.mxu0 0.0
        %251 = vmatpush1.msra.mxu0 0.0
        %252 = vmatprep.subr.mxu0 0.0
        %253 = vmatpush1.msra.mxu0 0.0
        %254 = vmatprep.subr.mxu0 0.0
        %255 = vmatpush1.msra.mxu0 0.0
        %256 = vmatprep.subr.mxu0 0.0
        %257 = vmatpush1.msra.mxu0 0.0
        %258 = vmatprep.subr.mxu0 0.0
        %259 = vmatpush1.msra.mxu0 0.0
        %260 = vmatprep.subr.mxu0 0.0
        %261 = vmatpush1.msra.mxu0 0.0
        %262 = vmatprep.subr.mxu0 0.0
        %263 = vmatpush1.msra.mxu0 0.0
        %264 = vmatprep.subr.mxu0 0.0
        %265 = vmatpush1.msra.mxu0 0.0
        %266 = vmatprep.subr.mxu0 0.0
        %267 = vmatpush1.msra.mxu0 0.0
        %268 = vmatprep.subr.mxu0 0.0
        %269 = vmatpush1.msra.mxu0 0.0
        %270 = vmatprep.subr.mxu0 0.0
        %271 = vmatpush1.msra.mxu0 0.0
        %272 = vmatprep.subr.mxu0 0.0
        %273 = vmatpush1.msra.mxu0 0.0
        %274 = vmatprep.subr.mxu0 0.0
        %275 = vmatpush1.msra.mxu0 0.0
        %276 = vmatprep.subr.mxu0 0.0
        %277 = vmatpush1.msra.mxu0 0.0
        %278 = vmatprep.subr.mxu0 0.0
        %279 = vmatpush1.msra.mxu0 0.0
        %280 = vmatprep.subr.mxu0 0.0
        %281 = vmatpush1.msra.mxu0 0.0
        %282 = vmatprep.subr.mxu0 0.0
        %283 = vmatpush1.msra.mxu0 0.0
        %284 = vmatprep.subr.mxu0 0.0
        %285 = vmatpush1.msra.mxu0 0.0
        %286 = vmatprep.subr.mxu0 0.0
        %287 = vmatpush1.msra.mxu0 0.0
        %288 = vmatprep.subr.mxu0 0.0
        %289 = vmatpush1.msra.mxu0 0.0
        %290 = vmatprep.mubr.f32.mxu0 0.0
        %291 = vmatmul.mubr.f32.gmra.mrb[0].mxu0 %v203
        %v292 = vpop.f32.mrb[0].mxu0
        %v293 = vadd.f32 0.0, %v292
        %v294 = vpop.f32.mrb[0].mxu0
        %295 = vmatprep.mubr.f32.mxu0 0.0
        %296 = vmatmul.mubr.f32.gmra.mrb[0].mxu0 %v206
        %v297 = vpop.f32.mrb[0].mxu0
        %v298 = vadd.f32 0.0, %v297
        %v299 = vpop.f32.mrb[0].mxu0
        %300 = vmatprep.mubr.f32.mxu0 0.0
        %301 = vmatmul.mubr.f32.gmra.mrb[0].mxu0 %v209
        %v302 = vpop.f32.mrb[0].mxu0
        %v303 = vadd.f32 0.0, %v302
        %v304 = vpop.f32.mrb[0].mxu0
        %305 = vmatprep.mubr.f32.mxu0 0.0
        %306 = vmatmul.mubr.f32.gmra.mrb[0].mxu0 %v212
        %v307 = vpop.f32.mrb[0].mxu0
        %v308 = vadd.f32 0.0, %v307
        %v309 = vpop.f32.mrb[0].mxu0
        %310 = vmatprep.mubr.f32.mxu0 0.0
        %311 = vmatmul.mubr.f32.gmra.mrb[0].mxu0 %v215
        %v312 = vpop.f32.mrb[0].mxu0
        %v313 = vadd.f32 0.0, %v312
        %v314 = vpop.f32.mrb[0].mxu0
        %315 = vmatprep.mubr.f32.mxu0 0.0
        %316 = vmatmul.mubr.f32.gmra.mrb[0].mxu0 %v218
        %v317 = vpop.f32.mrb[0].mxu0
        %v318 = vadd.f32 0.0, %v317
        %v319 = vpop.f32.mrb[0].mxu0
        %320 = vmatprep.mubr.f32.mxu0 0.0
        %321 = vmatmul.mubr.f32.gmra.mrb[0].mxu0 %v221
        %v322 = vpop.f32.mrb[0].mxu0
        %v323 = vadd.f32 0.0, %v322
        %v324 = vpop.f32.mrb[0].mxu0
        %325 = vmatprep.mubr.f32.mxu0 0.0
        %326 = vmatmul.mubr.f32.gmra.mrb[0].mxu0 %v224
        %v327 = vpop.f32.mrb[0].mxu0
        %v328 = vadd.f32 0.0, %v327
        %v329 = vpop.f32.mrb[0].mxu0
        %330 = vdwg.mxu0
        %v331 = vmax.f32 %v293, 0.0
        %v332 = vmax.f32 %v298, 0.0
        %v333 = vmax.f32 %v303, 0.0
        %v334 = vmax.f32 %v308, 0.0
        %v335 = vmax.f32 %v313, 0.0
        %v336 = vmax.f32 %v318, 0.0
        %v337 = vmax.f32 %v323, 0.0
        %v338 = vmax.f32 %v328, 0.0
        %v340 = vsel %vm201, %v191, 0
        %v343 = vsel %vm201, %v192, 0
        %v346 = vsel %vm201, %v193, 0
        %v349 = vsel %vm201, %v194, 0
        %v352 = vsel %vm201, %v195, 0
        %v355 = vsel %vm201, %v196, 0
        %v358 = vsel %vm201, %v197, 0
        %v361 = vsel %vm201, %v198, 0
        %v364 = vsel %vm201, %v199, 0
        %366 = vmatprep.subr.mxu0 0.0
        %367 = vmatpush1.msra.mxu0 %v173
        %368 = vmatprep.subr.mxu0 0.0
        %369 = vmatpush1.msra.mxu0 0.0
        %370 = vmatprep.subr.mxu0 0.0
        %371 = vmatpush1.msra.mxu0 0.0
        %372 = vmatprep.subr.mxu0 0.0
        %373 = vmatpush1.msra.mxu0 0.0
        %374 = vmatprep.subr.mxu0 0.0
        %375 = vmatpush1.msra.mxu0 0.0
        %376 = vmatprep.subr.mxu0 0.0
        %377 = vmatpush1.msra.mxu0 0.0
        %378 = vmatprep.subr.mxu0 0.0
        %379 = vmatpush1.msra.mxu0 0.0
        %380 = vmatprep.subr.mxu0 0.0
        %381 = vmatpush1.msra.mxu0 0.0
        %382 = vmatprep.subr.mxu0 0.0
        %383 = vmatpush1.msra.mxu0 0.0
        %384 = vmatprep.subr.mxu0 0.0
        %385 = vmatpush1.msra.mxu0 0.0
        %386 = vmatprep.subr.mxu0 0.0
        %387 = vmatpush1.msra.mxu0 0.0
        %388 = vmatprep.subr.mxu0 0.0
        %389 = vmatpush1.msra.mxu0 0.0
        %390 = vmatprep.subr.mxu0 0.0
        %391 = vmatpush1.msra.mxu0 0.0
        %392 = vmatprep.subr.mxu0 0.0
        %393 = vmatpush1.msra.mxu0 0.0
        %394 = vmatprep.subr.mxu0 0.0
        %395 = vmatpush1.msra.mxu0 0.0
        %396 = vmatprep.subr.mxu0 0.0
        %397 = vmatpush1.msra.mxu0 0.0
        %398 = vmatprep.subr.mxu0 0.0
        %399 = vmatpush1.msra.mxu0 0.0
        %400 = vmatprep.subr.mxu0 0.0
        %401 = vmatpush1.msra.mxu0 0.0
        %402 = vmatprep.subr.mxu0 0.0
        %403 = vmatpush1.msra.mxu0 0.0
        %404 = vmatprep.subr.mxu0 0.0
        %405 = vmatpush1.msra.mxu0 0.0
        %406 = vmatprep.subr.mxu0 0.0
        %407 = vmatpush1.msra.mxu0 0.0
        %408 = vmatprep.subr.mxu0 0.0
        %409 = vmatpush1.msra.mxu0 0.0
        %410 = vmatprep.subr.mxu0 0.0
        %411 = vmatpush1.msra.mxu0 0.0
        %412 = vmatprep.subr.mxu0 0.0
        %413 = vmatpush1.msra.mxu0 0.0
        %414 = vmatprep.subr.mxu0 0.0
        %415 = vmatpush1.msra.mxu0 0.0
        %416 = vmatprep.subr.mxu0 0.0
        %417 = vmatpush1.msra.mxu0 0.0
        %418 = vmatprep.subr.mxu0 0.0
        %419 = vmatpush1.msra.mxu0 0.0
        %420 = vmatprep.subr.mxu0 0.0
        %421 = vmatpush1.msra.mxu0 0.0
        %422 = vmatprep.subr.mxu0 0.0
        %423 = vmatpush1.msra.mxu0 0.0
        %424 = vmatprep.subr.mxu0 0.0
        %425 = vmatpush1.msra.mxu0 0.0
        %426 = vmatprep.subr.mxu0 0.0
        %427 = vmatpush1.msra.mxu0 0.0
        %428 = vmatprep.subr.mxu0 0.0
        %429 = vmatpush1.msra.mxu0 0.0
        %430 = vmatprep.mubr.f32.mxu0 0.0
        %431 = vmatmul.mubr.f32.gmra.mrb[0].mxu0 %v340
        %v432 = vpop.f32.mrb[0].mxu0
        %v433 = vadd.f32 0.0, %v432
        %v434 = vpop.f32.mrb[0].mxu0
        %435 = vmatprep.mubr.f32.mxu0 0.0
        %436 = vmatmul.mubr.f32.gmra.mrb[0].mxu0 %v343
        %v437 = vpop.f32.mrb[0].mxu0
        %v438 = vadd.f32 0.0, %v437
        %v439 = vpop.f32.mrb[0].mxu0
        %440 = vmatprep.mubr.f32.mxu0 0.0
        %441 = vmatmul.mubr.f32.gmra.mrb[0].mxu0 %v346
        %v442 = vpop.f32.mrb[0].mxu0
        %v443 = vadd.f32 0.0, %v442
        %v444 = vpop.f32.mrb[0].mxu0
        %445 = vmatprep.mubr.f32.mxu0 0.0
        %446 = vmatmul.mubr.f32.gmra.mrb[0].mxu0 %v349
        %v447 = vpop.f32.mrb[0].mxu0
        %v448 = vadd.f32 0.0, %v447
        %v449 = vpop.f32.mrb[0].mxu0
        %450 = vmatprep.mubr.f32.mxu0 0.0
        %451 = vmatmul.mubr.f32.gmra.mrb[0].mxu0 %v352
        %v452 = vpop.f32.mrb[0].mxu0
        %v453 = vadd.f32 0.0, %v452
        %v454 = vpop.f32.mrb[0].mxu0
        %455 = vmatprep.mubr.f32.mxu0 0.0
        %456 = vmatmul.mubr.f32.gmra.mrb[0].mxu0 %v355
        %v457 = vpop.f32.mrb[0].mxu0
        %v458 = vadd.f32 0.0, %v457
        %v459 = vpop.f32.mrb[0].mxu0
        %460 = vmatprep.mubr.f32.mxu0 0.0
        %461 = vmatmul.mubr.f32.gmra.mrb[0].mxu0 %v358
        %v462 = vpop.f32.mrb[0].mxu0
        %v463 = vadd.f32 0.0, %v462
        %v464 = vpop.f32.mrb[0].mxu0
        %465 = vmatprep.mubr.f32.mxu0 0.0
        %466 = vmatmul.mubr.f32.gmra.mrb[0].mxu0 %v361
        %v467 = vpop.f32.mrb[0].mxu0
        %v468 = vadd.f32 0.0, %v467
        %v469 = vpop.f32.mrb[0].mxu0
        %470 = vmatprep.mubr.f32.mxu0 0.0
        %471 = vmatmul.mubr.f32.gmra.mrb[0].mxu0 %v364
        %v472 = vpop.f32.mrb[0].mxu0
        %v473 = vadd.f32 0.0, %v472
        %v474 = vpop.f32.mrb[0].mxu0
        %475 = vdwg.mxu0
        %vm476 = vcmask 523264
        %v478 = vsel %vm476, %v182, 0
        %v481 = vsel %vm476, %v183, 0
        %v484 = vsel %vm476, %v184, 0
        %v487 = vsel %vm476, %v185, 0
        %v490 = vsel %vm476, %v186, 0
        %v493 = vsel %vm476, %v187, 0
        %v496 = vsel %vm476, %v188, 0
        %v499 = vsel %vm476, %v189, 0
        %v502 = vsel %vm476, %v190, 0
        %504 = vmatprep.subr.mxu0 0.0
        %505 = vmatpush1.msra.mxu0 %v331
        %506 = vmatprep.subr.mxu0 0.0
        %507 = vmatpush1.msra.mxu0 %v332
        %508 = vmatprep.subr.mxu0 0.0
        %509 = vmatpush1.msra.mxu0 %v333
        %510 = vmatprep.subr.mxu0 0.0
        %511 = vmatpush1.msra.mxu0 %v334
        %512 = vmatprep.subr.mxu0 0.0
        %513 = vmatpush1.msra.mxu0 %v335
        %514 = vmatprep.subr.mxu0 0.0
        %515 = vmatpush1.msra.mxu0 %v336
        %516 = vmatprep.subr.mxu0 0.0
        %517 = vmatpush1.msra.mxu0 %v337
        %518 = vmatprep.subr.mxu0 0.0
        %519 = vmatpush1.msra.mxu0 %v338
        %520 = vmatprep.subr.mxu0 0.0
        %521 = vmatpush1.msra.mxu0 0.0
        %522 = vmatprep.subr.mxu0 0.0
        %523 = vmatpush1.msra.mxu0 0.0
        %524 = vmatprep.subr.mxu0 0.0
        %525 = vmatpush1.msra.mxu0 0.0
        %526 = vmatprep.subr.mxu0 0.0
        %527 = vmatpush1.msra.mxu0 0.0
        %528 = vmatprep.subr.mxu0 0.0
        %529 = vmatpush1.msra.mxu0 0.0
        %530 = vmatprep.subr.mxu0 0.0
        %531 = vmatpush1.msra.mxu0 0.0
        %532 = vmatprep.subr.mxu0 0.0
        %533 = vmatpush1.msra.mxu0 0.0
        %534 = vmatprep.subr.mxu0 0.0
        %535 = vmatpush1.msra.mxu0 0.0
        %536 = vmatprep.subr.mxu0 0.0
        %537 = vmatpush1.msra.mxu0 0.0
        %538 = vmatprep.subr.mxu0 0.0
        %539 = vmatpush1.msra.mxu0 0.0
        %540 = vmatprep.subr.mxu0 0.0
        %541 = vmatpush1.msra.mxu0 0.0
        %542 = vmatprep.subr.mxu0 0.0
        %543 = vmatpush1.msra.mxu0 0.0
        %544 = vmatprep.subr.mxu0 0.0
        %545 = vmatpush1.msra.mxu0 0.0
        %546 = vmatprep.subr.mxu0 0.0
        %547 = vmatpush1.msra.mxu0 0.0
        %548 = vmatprep.subr.mxu0 0.0
        %549 = vmatpush1.msra.mxu0 0.0
        %550 = vmatprep.subr.mxu0 0.0
        %551 = vmatpush1.msra.mxu0 0.0
        %552 = vmatprep.subr.mxu0 0.0
        %553 = vmatpush1.msra.mxu0 0.0
        %554 = vmatprep.subr.mxu0 0.0
        %555 = vmatpush1.msra.mxu0 0.0
        %556 = vmatprep.subr.mxu0 0.0
        %557 = vmatpush1.msra.mxu0 0.0
        %558 = vmatprep.subr.mxu0 0.0
        %559 = vmatpush1.msra.mxu0 0.0
        %560 = vmatprep.subr.mxu0 0.0
        %561 = vmatpush1.msra.mxu0 0.0
        %562 = vmatprep.subr.mxu0 0.0
        %563 = vmatpush1.msra.mxu0 0.0
        %564 = vmatprep.subr.mxu0 0.0
        %565 = vmatpush1.msra.mxu0 0.0
        %566 = vmatprep.subr.mxu0 0.0
        %567 = vmatpush1.msra.mxu0 0.0
        %568 = vmatprep.mubr.f32.mxu0 0.0
        %569 = vmatmul.mubr.f32.gmra.mrb[0].mxu0 %v478
        %v570 = vpop.f32.mrb[0].mxu0
        %v571 = vadd.f32 %v433, %v570
        %v572 = vpop.f32.mrb[0].mxu0
        %573 = vmatprep.mubr.f32.mxu0 0.0
        %574 = vmatmul.mubr.f32.gmra.mrb[0].mxu0 %v481
        %v575 = vpop.f32.mrb[0].mxu0
        %v576 = vadd.f32 %v438, %v575
        %v577 = vpop.f32.mrb[0].mxu0
        %578 = vmatprep.mubr.f32.mxu0 0.0
        %579 = vmatmul.mubr.f32.gmra.mrb[0].mxu0 %v484
        %v580 = vpop.f32.mrb[0].mxu0
        %v581 = vadd.f32 %v443, %v580
        %v582 = vpop.f32.mrb[0].mxu0
        %583 = vmatprep.mubr.f32.mxu0 0.0
        %584 = vmatmul.mubr.f32.gmra.mrb[0].mxu0 %v487
        %v585 = vpop.f32.mrb[0].mxu0
        %v586 = vadd.f32 %v448, %v585
        %v587 = vpop.f32.mrb[0].mxu0
        %588 = vmatprep.mubr.f32.mxu0 0.0
        %589 = vmatmul.mubr.f32.gmra.mrb[0].mxu0 %v490
        %v590 = vpop.f32.mrb[0].mxu0
        %v591 = vadd.f32 %v453, %v590
        %v592 = vpop.f32.mrb[0].mxu0
        %593 = vmatprep.mubr.f32.mxu0 0.0
        %594 = vmatmul.mubr.f32.gmra.mrb[0].mxu0 %v493
        %v595 = vpop.f32.mrb[0].mxu0
        %v596 = vadd.f32 %v458, %v595
        %v597 = vpop.f32.mrb[0].mxu0
        %598 = vmatprep.mubr.f32.mxu0 0.0
        %599 = vmatmul.mubr.f32.gmra.mrb[0].mxu0 %v496
        %v600 = vpop.f32.mrb[0].mxu0
        %v601 = vadd.f32 %v463, %v600
        %v602 = vpop.f32.mrb[0].mxu0
        %603 = vmatprep.mubr.f32.mxu0 0.0
        %604 = vmatmul.mubr.f32.gmra.mrb[0].mxu0 %v499
        %v605 = vpop.f32.mrb[0].mxu0
        %v606 = vadd.f32 %v468, %v605
        %v607 = vpop.f32.mrb[0].mxu0
        %608 = vmatprep.mubr.f32.mxu0 0.0
        %609 = vmatmul.mubr.f32.gmra.mrb[0].mxu0 %v502
        %v610 = vpop.f32.mrb[0].mxu0
        %v611 = vadd.f32 %v473, %v610
        %v612 = vpop.f32.mrb[0].mxu0
        %613 = vdwg.mxu0
        %v614 = vmax.f32 %v571, 0.0
        %v615 = vmax.f32 %v576, 0.0
        %v616 = vmax.f32 %v581, 0.0
        %v617 = vmax.f32 %v586, 0.0
        %v618 = vmax.f32 %v591, 0.0
        %v619 = vmax.f32 %v596, 0.0
        %v620 = vmax.f32 %v601, 0.0
        %v621 = vmax.f32 %v606, 0.0
        %v622 = vmax.f32 %v611, 0.0
        %vm623 = vcmask 588800
        %v625 = vsel %vm623, %v200, 0
        %627 = vmatprep.subr.mxu0 0.0
        %628 = vmatpush1.msra.mxu0 %v614
        %629 = vmatprep.subr.mxu0 0.0
        %630 = vmatpush1.msra.mxu0 %v615
        %631 = vmatprep.subr.mxu0 0.0
        %632 = vmatpush1.msra.mxu0 %v616
        %633 = vmatprep.subr.mxu0 0.0
        %634 = vmatpush1.msra.mxu0 %v617
        %635 = vmatprep.subr.mxu0 0.0
        %636 = vmatpush1.msra.mxu0 %v618
        %637 = vmatprep.subr.mxu0 0.0
        %638 = vmatpush1.msra.mxu0 %v619
        %639 = vmatprep.subr.mxu0 0.0
        %640 = vmatpush1.msra.mxu0 %v620
        %641 = vmatprep.subr.mxu0 0.0
        %642 = vmatpush1.msra.mxu0 %v621
        %643 = vmatprep.subr.mxu0 0.0
        %644 = vmatpush1.msra.mxu0 %v622
        %645 = vmatprep.subr.mxu0 0.0
        %646 = vmatpush1.msra.mxu0 0.0
        %647 = vmatprep.subr.mxu0 0.0
        %648 = vmatpush1.msra.mxu0 0.0
        %649 = vmatprep.subr.mxu0 0.0
        %650 = vmatpush1.msra.mxu0 0.0
        %651 = vmatprep.subr.mxu0 0.0
        %652 = vmatpush1.msra.mxu0 0.0
        %653 = vmatprep.subr.mxu0 0.0
        %654 = vmatpush1.msra.mxu0 0.0
        %655 = vmatprep.subr.mxu0 0.0
        %656 = vmatpush1.msra.mxu0 0.0
        %657 = vmatprep.subr.mxu0 0.0
        %658 = vmatpush1.msra.mxu0 0.0
        %659 = vmatprep.subr.mxu0 0.0
        %660 = vmatpush1.msra.mxu0 0.0
        %661 = vmatprep.subr.mxu0 0.0
        %662 = vmatpush1.msra.mxu0 0.0
        %663 = vmatprep.subr.mxu0 0.0
        %664 = vmatpush1.msra.mxu0 0.0
        %665 = vmatprep.subr.mxu0 0.0
        %666 = vmatpush1.msra.mxu0 0.0
        %667 = vmatprep.subr.mxu0 0.0
        %668 = vmatpush1.msra.mxu0 0.0
        %669 = vmatprep.subr.mxu0 0.0
        %670 = vmatpush1.msra.mxu0 0.0
        %671 = vmatprep.subr.mxu0 0.0
        %672 = vmatpush1.msra.mxu0 0.0
        %673 = vmatprep.subr.mxu0 0.0
        %674 = vmatpush1.msra.mxu0 0.0
        %675 = vmatprep.subr.mxu0 0.0
        %676 = vmatpush1.msra.mxu0 0.0
        %677 = vmatprep.subr.mxu0 0.0
        %678 = vmatpush1.msra.mxu0 0.0
        %679 = vmatprep.subr.mxu0 0.0
        %680 = vmatpush1.msra.mxu0 0.0
        %681 = vmatprep.subr.mxu0 0.0
        %682 = vmatpush1.msra.mxu0 0.0
        %683 = vmatprep.subr.mxu0 0.0
        %684 = vmatpush1.msra.mxu0 0.0
        %685 = vmatprep.subr.mxu0 0.0
        %686 = vmatpush1.msra.mxu0 0.0
        %687 = vmatprep.subr.mxu0 0.0
        %688 = vmatpush1.msra.mxu0 0.0
        %689 = vmatprep.subr.mxu0 0.0
        %690 = vmatpush1.msra.mxu0 0.0
        %691 = vmatprep.mubr.f32.mxu0 0.0
        %692 = vmatmul.mubr.f32.gmra.mrb[0].mxu0 %v625
        %v693 = vpop.f32.mrb[0].mxu0
        %v694 = vadd.f32 0.0, %v693
        %v695 = vpop.f32.mrb[0].mxu0
        %696 = vdwg.mxu0
        %697 = vst [vmem:[%s172] sm:$0x1] %v694
        %s698 = sand.u32 %s75, 1
        %s699 = scalar_lea.sflag [#allocation4], %s698
        %s700 = sand.u32 %s75, 1
        %s701 = scalar_lea.vmem [#allocation7], %s700
        // Predicated region
        $region37: #{tpu_custom_call.1} parent=27 // pred_check
          %p702 = pneg %p85
        $region38: #{tpu_custom_call.1} parent=27 // pred_check_branch
          %704 = sbr.rel (%p702) target = $region40
        $region39: #{tpu_custom_call.1} parent=27 // pred_region
          %s706 = ssub.s32 16, 16
          %707 = vsyncadd %s699, %s706
          %s708 = smul.addr %s20, 16
          %s709 = scalar_lea.hbm %s2, %s708
          %s711 = sshll.u32 %s701, 4
          %s712 = int_to_ptr.vmem [resolvable:$true] %s711
          %714 = dma.vmem_to_hbm [thread:$0]  %s712, 16, %s709, %s699
        $region40: #{tpu_custom_call.1} parent=27 // pred_fallthru
          _
      $region28: #{tpu_custom_call.1} parent=5 // pred_fallthru
        _
      %p715 = scmp.le.s32.totalorder 2, %s15
      // Predicated region
      $region41: #{tpu_custom_call.1} parent=5 // pred_check
        %p716 = pneg %p715
      $region42: #{tpu_custom_call.1} parent=5 // pred_check_branch
        %718 = sbr.rel (%p716) target = $region44
      $region43: #{tpu_custom_call.1} parent=5 // pred_region
        %s719 = ssub.s32 %s15, 2
        // Predicated region
        $region45: #{tpu_custom_call.1} parent=43 // pred_check
          %p720 = pneg %p91
        $region46: #{tpu_custom_call.1} parent=43 // pred_check_branch
          %722 = sbr.rel (%p720) target = $region48
        $region47: #{tpu_custom_call.1} parent=43 // pred_region
          %s723 = sand.u32 %s76, 1
          %s724 = scalar_lea.sflag [#allocation4], %s723
          %s725 = sand.u32 %s76, 1
          %s726 = scalar_lea.vmem [#allocation7], %s725
          %727 = dma.done %s724, 16
        $region48: #{tpu_custom_call.1} parent=43 // pred_fallthru
          _
      $region44: #{tpu_custom_call.1} parent=5 // pred_fallthru
        _
    $region6: #{tpu_custom_call.1} parent=1 // loop_footer
      %s19 = sadd.s32 1, %s15
    $region7: #{tpu_custom_call.1} parent=1 // loop_footer_branch
      %14 = sbr.rel target = $region3
    $region8: #{tpu_custom_call.1} parent=1 // loop_exit
      _
    %728 = vsyncpa [#allocation3], 1
    %s729 = scalar_lea.sflag [#allocation3], 1
    %730 = vsyncpa %s729, 1
    %731 = vsyncpa [#allocation6], 1
    %732 = vsyncpa [#allocation4], 1
    %s733 = scalar_lea.sflag [#allocation4], 1
    %734 = vsyncpa %s733, 1

</llo_original>
